<compile_context>
chip_gen: v6e
topology: v6e:2x2x1
jax: 0.10.0
libtpu: 0.0.40
codegen_flags: <defaults>
</compile_context>

<pallas_src>
import functools

import jax
import jax.numpy as jnp
from jax.experimental import pallas as pl
from jax.experimental.pallas import tpu as pltpu


def _round_up(x, m):
    return (x + m - 1) // m * m


def _patch_embed_kernel(p_ref, w_ref, b_ref, o_ref):
    # p_ref: (TM, Kpad) bf16 patch rows     w_ref: (Kpad, TN) bf16 weights
    # b_ref: (1, TN)    f32 bias            o_ref: (TM, TN)   output
    # Single K step: one MXU dot with f32 accumulation, bias folded in once.
    o_ref[...] = (
        jnp.dot(p_ref[...], w_ref[...], preferred_element_type=jnp.float32)
        + b_ref[...]
    ).astype(o_ref.dtype)


def _pick_tm(m):
    # Large, sublane-friendly M tiles (multiple of 16 for bf16 packing);
    # prefer >= 2 tiles so both v7x TensorCores get work.
    if m >= 2 * 512:
        return 512
    if m >= 2 * 256:
        return 256
    if m >= 2 * 128:
        return 128
    if m >= 32:
        return _round_up((m + 1) // 2, 16)
    return _round_up(max(m, 1), 16)


def patch_embedding(x, weight, bias, patch_size):
    """x: (B, C, H, W), weight: (E, C, P, P), bias: (E,) -> (B, NP, E).

    Same semantics as nn.Conv2d(C, E, kernel_size=P, stride=P) followed by
    flatten(2).transpose(1, 2); matmul runs in bf16 with f32 accumulation.
    """
    B, C, H, W = x.shape
    E = weight.shape[0]
    P = patch_size
    Hp, Wp = H // P, W // P
    NP = Hp * Wp
    K = C * P * P
    M = B * NP

    # --- pre-pass: patch extraction (bf16 first so the HBM shuffle moves
    # half the bytes; cast/transpose/pad fuse into one pass under jit). ---
    xb = x[:, :, : Hp * P, : Wp * P].astype(jnp.bfloat16)
    patches = (
        xb.reshape(B, C, Hp, P, Wp, P)
        .transpose(0, 2, 4, 1, 3, 5)          # (B, Hp, Wp, C, P, P)
        .reshape(M, K)                         # flattened in (C, kh, kw) order
    )

    # Conv2d weight (E, C, P, P) -> (K, E) so that patches @ w == conv output.
    w_mat = weight.astype(jnp.bfloat16).reshape(E, K).T    # (K, E)

    # --- tiling: full-K, grid-invariant weights, lane-dense output ---
    Kpad = _round_up(K, 128)          # lane-dense patch loads, clean MXU K feed
    Epad = _round_up(E, 128)
    TM = _pick_tm(M)
    TN = Epad                         # any 128-multiple; full E -> weight DMA'd once

    # Keep double-buffered block bytes within the smallest default scoped VMEM.
    def vmem_bytes(tm, tn):
        return 2 * (tm * Kpad * 2 + Kpad * tn * 2 + tm * tn * 4 + tn * 4)

    budget = 12 * 1024 * 1024
    while vmem_bytes(TM, TN) > budget and TN > 128:
        tn = TN // 2
        TN = tn if (tn % 128 == 0 and Epad % tn == 0) else 128
    while vmem_bytes(TM, TN) > budget and TM > 16:
        TM = max(16, _round_up(TM // 2, 16))

    Mpad = _round_up(M, TM)

    patches_p = jnp.pad(patches, ((0, Mpad - M), (0, Kpad - K)))
    w_p = jnp.pad(w_mat, ((0, Kpad - K), (0, Epad - E)))
    b_p = jnp.pad(bias.astype(jnp.float32), (0, Epad - E)).reshape(1, Epad)

    grid = (Mpad // TM, Epad // TN)

    out = pl.pallas_call(
        _patch_embed_kernel,
        out_shape=jax.ShapeDtypeStruct((Mpad, Epad), x.dtype),
        grid_spec=pltpu.PrefetchScalarGridSpec(
            num_scalar_prefetch=0,
            grid=grid,
            in_specs=[
                pl.BlockSpec((TM, Kpad), lambda i, j: (i, 0)),   # patches
                pl.BlockSpec((Kpad, TN), lambda i, j: (0, j)),   # weights (invariant in i)
                pl.BlockSpec((1, TN), lambda i, j: (0, j)),      # bias    (invariant in i)
            ],
            out_specs=pl.BlockSpec((TM, TN), lambda i, j: (i, j)),
        ),
        compiler_params=pltpu.CompilerParams(
            dimension_semantics=("parallel", "parallel"),
        ),
    )(patches_p, w_p, b_p)

    return out[:M, :E].reshape(B, NP, E)


if __name__ == "__main__":
    # Small shapes consistent with the module: img_size=16, patch_size=4,
    # in_chans=4, embed_dim=32, batch=2  ->  num_patches = (16//4)**2 = 16.
    B, C, H, W = 2, 4, 16, 16
    P = 4
    E = 32

    key = jax.random.PRNGKey(0)
    kx, kw, kb = jax.random.split(key, 3)
    x = jax.random.normal(kx, (B, C, H, W), dtype=jnp.float32)
    weight = jax.random.normal(kw, (E, C, P, P), dtype=jnp.float32) * 0.02
    bias = jax.random.normal(kb, (E,), dtype=jnp.float32) * 0.02

    fwd = jax.jit(functools.partial(patch_embedding, patch_size=P))
    out = jax.block_until_ready(fwd(x, weight, bias))

    # Pure-JAX f32 reference (same math as nn.Conv2d with stride==kernel==P,
    # then flatten(2).transpose(1,2)).
    ref = jax.lax.conv_general_dilated(
        x, weight, window_strides=(P, P), padding="VALID",
        dimension_numbers=("NCHW", "OIHW", "NCHW"),
    ) + bias.reshape(1, E, 1, 1)
    ref = ref.reshape(B, E, -1).transpose(0, 2, 1)       # (B, NP, E)

    assert out.shape == (B, (H // P) * (W // P), E), out.shape
    # bf16 operands / f32 accumulation -> loosened tolerance vs f32 reference.
    assert jnp.allclose(out, ref, atol=2e-2, rtol=5e-2), "mismatch vs reference"
    print("KERNEL_OK")
</pallas_src>

<mosaic_0001>
module attributes {stable_mosaic.version = 11 : i64} {
  func.func @_patch_embed_kernel(%arg0: i32, %arg1: i32, %arg2: memref<16x128xbf16, #tpu.memory_space<vmem>>, %arg3: memref<128x128xbf16, #tpu.memory_space<vmem>>, %arg4: memref<1x128xf32, #tpu.memory_space<vmem>>, %arg5: memref<16x128xf32, #tpu.memory_space<vmem>>) attributes {dimension_semantics = [#tpu.dimension_semantics<parallel>, #tpu.dimension_semantics<parallel>], iteration_bounds = array<i64: 2, 1>, scalar_prefetch = 0 : i64, scratch_operands = 0 : i64, tpu.core_type = #tpu.core_type<tc>, window_params = [{transform_indices = @transform_0, window_bounds = array<i64: 16, 128>}, {transform_indices = @transform_1, window_bounds = array<i64: 128, 128>}, {transform_indices = @transform_2, window_bounds = array<i64: 1, 128>}, {transform_indices = @transform_3, window_bounds = array<i64: 16, 128>}]} {
    %c0 = arith.constant 0 : index
    %c0_0 = arith.constant 0 : index
    %0 = vector.load %arg2[%c0, %c0_0] : memref<16x128xbf16, #tpu.memory_space<vmem>>, vector<16x128xbf16>
    %c0_1 = arith.constant 0 : index
    %c0_2 = arith.constant 0 : index
    %1 = vector.load %arg3[%c0_1, %c0_2] : memref<128x128xbf16, #tpu.memory_space<vmem>>, vector<128x128xbf16>
    %cst = arith.constant dense<0.000000e+00> : vector<16x128xf32>
    %2 = tpu.matmul %0, %1, %cst {dimension_numbers = #tpu.dot_dimension_numbers<[1], [0], [0], [1], [0, 0, 1, 1], [], []>} : vector<16x128xbf16>, vector<128x128xbf16>, vector<16x128xf32> -> vector<16x128xf32>
    %c0_3 = arith.constant 0 : index
    %c0_4 = arith.constant 0 : index
    %3 = vector.load %arg4[%c0_3, %c0_4] : memref<1x128xf32, #tpu.memory_space<vmem>>, vector<1x128xf32>
    %4 = vector.broadcast %3 : vector<1x128xf32> to vector<16x128xf32>
    %5 = arith.addf %2, %4 : vector<16x128xf32>
    %c0_5 = arith.constant 0 : index
    %c0_6 = arith.constant 0 : index
    %6 = vector.load %arg5[%c0_5, %c0_6] : memref<16x128xf32, #tpu.memory_space<vmem>>, vector<16x128xf32>
    tpu.vector_store %arg5[%c0_5, %c0_6], %5 {strides = array<i32>} : memref<16x128xf32, #tpu.memory_space<vmem>>, vector<16x128xf32>,
    return
  }
  func.func @transform_0(%arg0: i32, %arg1: i32) -> (i32, i32) {
    %c0_i32 = arith.constant 0 : i32
    %c0_i32_0 = arith.constant 0 : i32
    return %arg0, %c0_i32 : i32, i32
  }
  func.func @transform_1(%arg0: i32, %arg1: i32) -> (i32, i32) {
    %c0_i32 = arith.constant 0 : i32
    %c0_i32_0 = arith.constant 0 : i32
    return %c0_i32, %arg1 : i32, i32
  }
  func.func @transform_2(%arg0: i32, %arg1: i32) -> (i32, i32) {
    %c0_i32 = arith.constant 0 : i32
    %c0_i32_0 = arith.constant 0 : i32
    return %c0_i32, %arg1 : i32, i32
  }
  func.func @transform_3(%arg0: i32, %arg1: i32) -> (i32, i32) {
    %c0_i32 = arith.constant 0 : i32
    return %arg0, %arg1 : i32, i32
  }
}

</mosaic_0001>

<llo_original>
// kernel: patch_embedding.1
$region0: #{patch_embedding.1}
  #allocation0 [shape = 'u32[]', space=smem, size = 0x4, offset = 0x4, fixed_abs, tag = 'smem constant byte address 0x4 - core index']
  #allocation1 [shape = 'u32[144,128]{1,0:T(1,128)}', space=vmem, size = 0x12000, scoped, tag = 'internal scratch']
  %s0 = inlined_call_operand.vmem [shape: bf16[32,128], index: 0, kind: input, shape index: {}]
  %s1 = inlined_call_operand.vmem [shape: bf16[128,128], index: 1, kind: input, shape index: {}]
  %s2 = inlined_call_operand.vmem [shape: f32[1,128], index: 2, kind: input, shape index: {}]
  %s3 = inlined_call_operand.hbm [shape: f32[32,128], index: 3, kind: output, shape index: {}]
  %s4 = sld [smem:[#allocation0]]
  $region45: #{patch_embedding.1} parent=0
    _
  %s6 = ssub.s32 1, %s4
  %s7 = scalar_select 0, %s6, %s4
  $region1: #{patch_embedding.1} parent=0
    #allocation2 [shape = 'u8[16384]{0}', space=vmem, size = 0x4000, scoped, tag = 'output window, operand 0']
    #allocation3 [shape = 's32[2]{0}', space=sflag, size = 0x8, scoped, tag = 'scoped memory for patch_embedding.1']
    %8 = vsyncpa [#allocation3], 0
    %s9 = scalar_lea.sflag [#allocation3], 1
    %10 = vsyncpa %s9, 0
    loop: start=0, step=1, limit=4
    $region2: #{patch_embedding.1} parent=1 // loop_pre_header
      _
    $region3: #{patch_embedding.1} parent=1 // loop_header
      %s12 = sphi 0, %s16
      %p13 = scmp.ge.s32.totalorder %s12, 4
      %s19 = sphi 0, %s31
      %s20 = sphi 0, %s27
      %s21 = sphi 0, %s19
      %s22 = sphi 0, %s20
      %s23 = sphi 0, %s21
      %s24 = sphi 0, %s22
      %s34 = sphi 0, %s36
      %s37 = sphi 0, %s34
      %s38 = sphi 0, %s37
      %s54 = sphi 0, %s38
      %s60 = sphi 0, %s62
      %s63 = sphi 0, %s60
      %s64 = sphi 0, %s63
      %s80 = sphi 0, %s64
      %s86 = sphi 0, %s88
      %s89 = sphi 0, %s86
      %s90 = sphi 0, %s89
      %s106 = sphi 0, %s90
      %s114 = sphi 0, %s116
      %s117 = sphi 0, %s114
      %s118 = sphi 0, %s117
      %s134 = sphi 0, %s118
    $region4: #{patch_embedding.1} parent=1 // loop_header_branch
      %15 = sbr.rel (%p13) target = $region8
    $region5: #{patch_embedding.1} parent=1 // loop_body
      %s17 = ssub.s32 %s12, 1
      %s18 = ssub.s32 %s12, 2
      %s25 = sadd.s32 1, %s20
      %p26 = scmp.ge.s32.totalorder %s25, 1
      %s27 = scalar_select %p26, 0, %s25
      %s28 = sadd.s32 1, %s19
      %s29 = scalar_select %p26, %s28, %s19
      %p30 = scmp.ge.s32.totalorder %s29, 2
      %s31 = scalar_select %p30, 0, %s29
      %s32 = ssub.s32 %s19, %s31
      %p33 = scmp.eq.s32.totalorder %s32, 0
      %s35 = sadd.s32 %s34, 1
      %s36 = scalar_select %p33, %s34, %s35
      %p39 = pneg %p33
      %p40 = scmp.eq.s32.totalorder %s12, 1
      %p41 = por %p39, %p40
      %p42 = scmp.ne.s32.totalorder %s34, %s37
      %p43 = scmp.eq.s32.totalorder %s12, 0
      %p44 = por %p42, %p43
      %p45 = scmp.ne.s32.totalorder %s34, %s37
      %p46 = scmp.eq.s32.totalorder %s17, 1
      %p47 = por %p45, %p46
      %p48 = scmp.ne.s32.totalorder %s37, %s38
      %p49 = scmp.eq.s32.totalorder %s17, 0
      %p50 = por %p48, %p49
      %p51 = scmp.ne.s32.totalorder %s37, %s38
      %p52 = scmp.eq.s32.totalorder %s18, 1
      %p53 = por %p51, %p52
      %p55 = scmp.ne.s32.totalorder %s38, %s54
      %p56 = scmp.eq.s32.totalorder %s18, 0
      %p57 = por %p55, %p56
      %s58 = ssub.s32 %s20, %s27
      %p59 = scmp.eq.s32.totalorder %s58, 0
      %s61 = sadd.s32 %s60, 1
      %s62 = scalar_select %p59, %s60, %s61
      %p65 = pneg %p59
      %p66 = scmp.eq.s32.totalorder %s12, 1
      %p67 = por %p65, %p66
      %p68 = scmp.ne.s32.totalorder %s60, %s63
      %p69 = scmp.eq.s32.totalorder %s12, 0
      %p70 = por %p68, %p69
      %p71 = scmp.ne.s32.totalorder %s60, %s63
      %p72 = scmp.eq.s32.totalorder %s17, 1
      %p73 = por %p71, %p72
      %p74 = scmp.ne.s32.totalorder %s63, %s64
      %p75 = scmp.eq.s32.totalorder %s17, 0
      %p76 = por %p74, %p75
      %p77 = scmp.ne.s32.totalorder %s63, %s64
      %p78 = scmp.eq.s32.totalorder %s18, 1
      %p79 = por %p77, %p78
      %p81 = scmp.ne.s32.totalorder %s64, %s80
      %p82 = scmp.eq.s32.totalorder %s18, 0
      %p83 = por %p81, %p82
      %s84 = ssub.s32 %s20, %s27
      %p85 = scmp.eq.s32.totalorder %s84, 0
      %s87 = sadd.s32 %s86, 1
      %s88 = scalar_select %p85, %s86, %s87
      %p91 = pneg %p85
      %p92 = scmp.eq.s32.totalorder %s12, 1
      %p93 = por %p91, %p92
      %p94 = scmp.ne.s32.totalorder %s86, %s89
      %p95 = scmp.eq.s32.totalorder %s12, 0
      %p96 = por %p94, %p95
      %p97 = scmp.ne.s32.totalorder %s86, %s89
      %p98 = scmp.eq.s32.totalorder %s17, 1
      %p99 = por %p97, %p98
      %p100 = scmp.ne.s32.totalorder %s89, %s90
      %p101 = scmp.eq.s32.totalorder %s17, 0
      %p102 = por %p100, %p101
      %p103 = scmp.ne.s32.totalorder %s89, %s90
      %p104 = scmp.eq.s32.totalorder %s18, 1
      %p105 = por %p103, %p104
      %p107 = scmp.ne.s32.totalorder %s90, %s106
      %p108 = scmp.eq.s32.totalorder %s18, 0
      %p109 = por %p107, %p108
      %s110 = ssub.s32 %s19, %s31
      %s111 = ssub.s32 %s20, %s27
      %s112 = sor.u32 %s110, %s111
      %p113 = scmp.eq.s32.totalorder %s112, 0
      %s115 = sadd.s32 %s114, 1
      %s116 = scalar_select %p113, %s114, %s115
      %p119 = pneg %p113
      %p120 = scmp.eq.s32.totalorder %s12, 1
      %p121 = por %p119, %p120
      %p122 = scmp.ne.s32.totalorder %s114, %s117
      %p123 = scmp.eq.s32.totalorder %s12, 0
      %p124 = por %p122, %p123
      %p125 = scmp.ne.s32.totalorder %s114, %s117
      %p126 = scmp.eq.s32.totalorder %s17, 1
      %p127 = por %p125, %p126
      %p128 = scmp.ne.s32.totalorder %s117, %s118
      %p129 = scmp.eq.s32.totalorder %s17, 0
      %p130 = por %p128, %p129
      %p131 = scmp.ne.s32.totalorder %s117, %s118
      %p132 = scmp.eq.s32.totalorder %s18, 1
      %p133 = por %p131, %p132
      %p135 = scmp.ne.s32.totalorder %s118, %s134
      %p136 = scmp.eq.s32.totalorder %s18, 0
      %p137 = por %p135, %p136
      %p138 = scmp.le.s32.totalorder 1, %s12
      %p139 = scmp.lt.s32.totalorder %s12, 3
      %p140 = pnand %p138, %p139
      %p141 = pneg %p140
      // Predicated region
      $region9: #{patch_embedding.1} parent=5 // pred_check
        _
      $region10: #{patch_embedding.1} parent=5 // pred_check_branch
        %143 = sbr.rel (%p140) target = $region12
      $region11: #{patch_embedding.1} parent=5 // pred_region
        %s144 = ssub.s32 %s12, 1
        // Predicated region
        $region13: #{patch_embedding.1} parent=11 // pred_check
          %p145 = pneg %p76
        $region14: #{patch_embedding.1} parent=11 // pred_check_branch
          %147 = sbr.rel (%p145) target = $region16
        $region15: #{patch_embedding.1} parent=11 // pred_region
          %p148 = scmp.lt.s32.totalorder %s22, 0
          %s149 = scalar_select %p148, %s22, 0
          %s150 = smul.addr %s149, 4
          %s151 = scalar_lea.vmem %s1, %s150
        $region16: #{patch_embedding.1} parent=11 // pred_fallthru
          _
        // Predicated region
        $region17: #{patch_embedding.1} parent=11 // pred_check
          %p152 = pneg %p102
        $region18: #{patch_embedding.1} parent=11 // pred_check_branch
          %154 = sbr.rel (%p152) target = $region20
        $region19: #{patch_embedding.1} parent=11 // pred_region
          %p155 = scmp.lt.s32.totalorder %s22, 0
          %s156 = scalar_select %p155, %s22, 0
          %s157 = scalar_lea.vmem %s2, %s156
        $region20: #{patch_embedding.1} parent=11 // pred_fallthru
          _
      $region12: #{patch_embedding.1} parent=5 // pred_fallthru
        _
      %p158 = scmp.lt.s32.totalorder %s12, 2
      // Predicated region
      $region21: #{patch_embedding.1} parent=5 // pred_check
        %p159 = pneg %p158
      $region22: #{patch_embedding.1} parent=5 // pred_check_branch
        %161 = sbr.rel (%p159) target = $region24
      $region23: #{patch_embedding.1} parent=5 // pred_region
        // Predicated region
        $region25: #{patch_embedding.1} parent=23 // pred_check
          %p162 = pneg %p44
        $region26: #{patch_embedding.1} parent=23 // pred_check_branch
          %164 = sbr.rel (%p162) target = $region28
        $region27: #{patch_embedding.1} parent=23 // pred_region
          %s165 = smul.u32 2, %s19
          %p166 = scmp.lt.s32.totalorder %s165, 3
          %s167 = scalar_select %p166, %s165, 3
          %s168 = smul.addr %s167, 4
          %s169 = scalar_lea.vmem %s0, %s168
          %s170 = smul.u32 2, %s19
        $region28: #{patch_embedding.1} parent=23 // pred_fallthru
          _
      $region24: #{patch_embedding.1} parent=5 // pred_fallthru
        _
      %p171 = scmp.le.s32.totalorder 1, %s12
      %p172 = scmp.lt.s32.totalorder %s12, 3
      %p173 = pnand %p171, %p172
      %p174 = pneg %p173
      // Predicated region
      $region29: #{patch_embedding.1} parent=5 // pred_check
        _
      $region30: #{patch_embedding.1} parent=5 // pred_check_branch
        %176 = sbr.rel (%p173) target = $region32
      $region31: #{patch_embedding.1} parent=5 // pred_region
        %s177 = ssub.s32 %s12, 1
        %s178 = smul.u32 2, %s21
        %p179 = scmp.lt.s32.totalorder %s178, 3
        %s180 = scalar_select %p179, %s178, 3
        %s181 = smul.addr %s180, 4
        %s182 = scalar_lea.vmem %s0, %s181
        %p183 = pneg %p50
        %p184 = pneg %p47
        %p185 = scmp.lt.s32.totalorder %s22, 0
        %s186 = scalar_select %p185, %s22, 0
        %s187 = smul.addr %s186, 4
        %s188 = scalar_lea.vmem %s1, %s187
        %p189 = pneg %p76
        %p190 = pneg %p73
        %p191 = scmp.lt.s32.totalorder %s22, 0
        %s192 = scalar_select %p191, %s22, 0
        %s193 = scalar_lea.vmem %s2, %s192
        %p194 = pneg %p102
        %p195 = pneg %p99
        %p196 = pneg %p130
        %p197 = pneg %p127
        %s198 = sand.u32 %s117, 1
        %s199 = scalar_lea.sflag [#allocation3], %s198
        %s200 = sand.u32 %s117, 1
        %s201 = smul.addr %s200, 16
        %s202 = scalar_lea.vmem [#allocation2], %s201
        %s203 = smul.u32 2, %s21
        %p204 = scmp.lt.s32.totalorder %s203, 3
        %s205 = scalar_select %p204, %s203, 3
        %s206 = smul.addr %s205, 4
        %s207 = scalar_lea.vmem %s0, %s206
        %s208 = smul.u32 2, %s21
        %p209 = scmp.lt.s32.totalorder %s22, 0
        %s210 = scalar_select %p209, %s22, 0
        %s211 = smul.addr %s210, 4
        %s212 = scalar_lea.vmem %s1, %s211
        %p213 = scmp.lt.s32.totalorder %s22, 0
        %s214 = scalar_select %p213, %s22, 0
        %s215 = scalar_lea.vmem %s2, %s214
        %s216 = smul.u32 2, %s21
        %v218 = vld [vmem:[%s207] sm:$0xf]
        %v219 = vld [vmem:[%s207 + $0x4] sm:$0xf]
        %v220 = vld [vmem:[%s212] sm:$0xf]
        %v221 = vld [vmem:[%s212 + $0x4] sm:$0xf]
        %v222 = vld [vmem:[%s212 + $0x8] sm:$0xf]
        %v223 = vld [vmem:[%s212 + $0xc] sm:$0xf]
        %v224 = vld [vmem:[%s212 + $0x10] sm:$0xf]
        %v225 = vld [vmem:[%s212 + $0x14] sm:$0xf]
        %v226 = vld [vmem:[%s212 + $0x18] sm:$0xf]
        %v227 = vld [vmem:[%s212 + $0x1c] sm:$0xf]
        %v228 = vld [vmem:[%s212 + $0x20] sm:$0xf]
        %v229 = vld [vmem:[%s212 + $0x24] sm:$0xf]
        %v230 = vld [vmem:[%s212 + $0x28] sm:$0xf]
        %v231 = vld [vmem:[%s212 + $0x2c] sm:$0xf]
        %v232 = vld [vmem:[%s212 + $0x30] sm:$0xf]
        %v233 = vld [vmem:[%s212 + $0x34] sm:$0xf]
        %v234 = vld [vmem:[%s212 + $0x38] sm:$0xf]
        %v235 = vld [vmem:[%s212 + $0x3c] sm:$0xf]
        %v236 = vld [vmem:[%s215] sm:$0x1]
        %v238 = vlaneseq
        %v239 = vshrl.u32 %v238, 7
        %v240 = vsub.s32 0, %v239
        %v241 = vrot.slane %v236, %v240
        %v245 = vunpack.c.l.b16 %v218
        %v246 = vunpack.c.l.b16 %v219
        %v247 = vpack.c.b16 %v246, %v245
        %v265 = vunpack.c.l.b16 %v220
        %v266 = vunpack.c.l.b16 %v221
        %v267 = vunpack.c.l.b16 %v222
        %v268 = vunpack.c.l.b16 %v223
        %v269 = vunpack.c.l.b16 %v224
        %v270 = vunpack.c.l.b16 %v225
        %v271 = vunpack.c.l.b16 %v226
        %v272 = vunpack.c.l.b16 %v227
        %v273 = vunpack.c.l.b16 %v228
        %v274 = vunpack.c.l.b16 %v229
        %v275 = vunpack.c.l.b16 %v230
        %v276 = vunpack.c.l.b16 %v231
        %v277 = vunpack.c.l.b16 %v232
        %v278 = vunpack.c.l.b16 %v233
        %v279 = vunpack.c.l.b16 %v234
        %v280 = vunpack.c.l.b16 %v235
        %v281 = vpack.c.b16 %v266, %v265
        %v282 = vpack.c.b16 %v268, %v267
        %v283 = vpack.c.b16 %v270, %v269
        %v284 = vpack.c.b16 %v272, %v271
        %v285 = vpack.c.b16 %v274, %v273
        %v286 = vpack.c.b16 %v276, %v275
        %v287 = vpack.c.b16 %v278, %v277
        %v288 = vpack.c.b16 %v280, %v279
        %297 = vmatprep.subr.bf16.mxu0 0
        %298 = vmatpush1.bf16.msra.mxu0 %v288
        %299 = vmatprep.subr.bf16.mxu0 0
        %300 = vmatpush1.bf16.msra.mxu0 %v287
        %301 = vmatprep.subr.bf16.mxu0 0
        %302 = vmatpush1.bf16.msra.mxu0 %v286
        %303 = vmatprep.subr.bf16.mxu0 0
        %304 = vmatpush1.bf16.msra.mxu0 %v285
        %305 = vmatprep.subr.bf16.mxu0 0
        %306 = vmatpush1.bf16.msra.mxu0 %v284
        %307 = vmatprep.subr.bf16.mxu0 0
        %308 = vmatpush1.bf16.msra.mxu0 %v283
        %309 = vmatprep.subr.bf16.mxu0 0
        %310 = vmatpush1.bf16.msra.mxu0 %v282
        %311 = vmatprep.subr.bf16.mxu0 0
        %312 = vmatpush1.bf16.msra.mxu0 %v281
        %313 = vmatprep.subr.bf16.mxu0 0
        %314 = vmatpush2.bf16.msra.mxu0 0
        %315 = vmatprep.subr.bf16.mxu0 0
        %316 = vmatpush2.bf16.msra.mxu0 0
        %317 = vmatprep.subr.bf16.mxu0 0
        %318 = vmatpush2.bf16.msra.mxu0 0
        %319 = vmatprep.subr.bf16.mxu0 0
        %320 = vmatpush2.bf16.msra.mxu0 0
        %321 = vmatprep.subr.bf16.mxu0 0
        %322 = vmatpush2.bf16.msra.mxu0 0
        %323 = vmatprep.subr.bf16.mxu0 0
        %324 = vmatpush2.bf16.msra.mxu0 0
        %325 = vmatprep.subr.bf16.mxu0 0
        %326 = vmatpush2.bf16.msra.mxu0 0
        %327 = vmatprep.subr.bf16.mxu0 0
        %328 = vmatpush2.bf16.msra.mxu0 0
        %329 = vmatprep.mubr.bf16.mxu0 0
        %330 = vmatmul.mubr.bf16.gmra.mxu0 %v247
        %v331 = vpop.f32.mrf.mxu0
        %v332 = vadd.f32 %v241, %v331
        %v333 = vpop.f32.mrf.mxu0
        %v334 = vpop.f32.mrf.mxu0
        %v335 = vadd.f32 %v241, %v334
        %v336 = vpop.f32.mrf.mxu0
        %337 = vdwg.mxu0
        %338 = vst [vmem:[%s202] sm:$0xff] %v332
        %339 = vst [vmem:[%s202 + $0x8] sm:$0xff] %v335
        %s340 = sand.u32 %s117, 1
        %s341 = scalar_lea.sflag [#allocation3], %s340
        %s342 = sand.u32 %s117, 1
        %s343 = smul.addr %s342, 16
        %s344 = scalar_lea.vmem [#allocation2], %s343
        // Predicated region
        $region33: #{patch_embedding.1} parent=31 // pred_check
          %p345 = pneg %p127
        $region34: #{patch_embedding.1} parent=31 // pred_check_branch
          %347 = sbr.rel (%p345) target = $region36
        $region35: #{patch_embedding.1} parent=31 // pred_region
          %s348 = smul.u32 2, %s21
          %s350 = ssub.s32 256, 256
          %351 = vsyncadd %s341, %s350
          %s352 = sadd.s32 %s22, %s348
          %s353 = smul.addr %s352, 128
          %s354 = scalar_lea.hbm %s3, %s353
          %s355 = sshll.u32 %s344, 4
          %s356 = int_to_ptr.vmem [resolvable:$true] %s355
          %361 = dma.vmem_to_hbm [thread:$0]  %s356, 256, %s354, %s341, 128, 128, 8
        $region36: #{patch_embedding.1} parent=31 // pred_fallthru
          _
      $region32: #{patch_embedding.1} parent=5 // pred_fallthru
        _
      %p362 = scmp.le.s32.totalorder 2, %s12
      // Predicated region
      $region37: #{patch_embedding.1} parent=5 // pred_check
        %p363 = pneg %p362
      $region38: #{patch_embedding.1} parent=5 // pred_check_branch
        %365 = sbr.rel (%p363) target = $region40
      $region39: #{patch_embedding.1} parent=5 // pred_region
        %s366 = ssub.s32 %s12, 2
        // Predicated region
        $region41: #{patch_embedding.1} parent=39 // pred_check
          %p367 = pneg %p133
        $region42: #{patch_embedding.1} parent=39 // pred_check_branch
          %369 = sbr.rel (%p367) target = $region44
        $region43: #{patch_embedding.1} parent=39 // pred_region
          %s370 = sand.u32 %s118, 1
          %s371 = scalar_lea.sflag [#allocation3], %s370
          %s372 = sand.u32 %s118, 1
          %s373 = smul.addr %s372, 16
          %s374 = scalar_lea.vmem [#allocation2], %s373
          %375 = dma.done %s371, 256
        $region44: #{patch_embedding.1} parent=39 // pred_fallthru
          _
      $region40: #{patch_embedding.1} parent=5 // pred_fallthru
        _
    $region6: #{patch_embedding.1} parent=1 // loop_footer
      %s16 = sadd.s32 1, %s12
    $region7: #{patch_embedding.1} parent=1 // loop_footer_branch
      %11 = sbr.rel target = $region3
    $region8: #{patch_embedding.1} parent=1 // loop_exit
      _
    %376 = vsyncpa [#allocation3], 1
    %s377 = scalar_lea.sflag [#allocation3], 1
    %378 = vsyncpa %s377, 1

</llo_original>
